<compile_context>
chip_gen: v5e
topology: v5e:2x2
jax: 0.10.0
libtpu: 0.0.40
codegen_flags: <defaults>
</compile_context>

<pallas_src>
import jax
import jax.numpy as jnp
from jax import lax
from jax.experimental import pallas as pl
from jax.experimental.pallas import tpu as pltpu


def _round_up(x, m):
    return (x + m - 1) // m * m


def scnn_decoder_kernel(x_ref, w1_ref, bias_ref, w2_ref, o_ref):
    # x_ref:    (BN, H+2, W+2, Cin)   bf16, zero-padded input block
    # w1_ref:   (3, 3*Cin, Cmid_p)    bf16, 3x3 weights with BN scale folded in
    # bias_ref: (1, Cmid_p)           f32,  folded BN bias
    # w2_ref:   (Cmid_p, NC_p)        bf16, 1x1 conv weights (zero-padded)
    # o_ref:    (BN*H*W, NC_p)        f32,  lane-dense output slab
    BN, Hp2, Wp2, Cin = x_ref.shape
    H, W = Hp2 - 2, Wp2 - 2
    Cmid_p = w1_ref.shape[2]
    M = BN * H * W

    x = x_ref[...]

    # 3x3 conv as 3 MXU matmuls with K = 3*Cin: for each dh, the three
    # dw-shifted taps are concatenated along the channel/lane axis.
    acc = jnp.zeros((M, Cmid_p), jnp.float32)
    for dh in range(3):
        patch = jnp.concatenate(
            [x[:, dh:dh + H, dw:dw + W, :] for dw in range(3)], axis=-1)
        acc += jnp.dot(patch.reshape(M, 3 * Cin), w1_ref[dh],
                       preferred_element_type=jnp.float32)

    # Fused BN bias + ReLU on the VPU (scale already folded into w1).
    y = jnp.maximum(acc + bias_ref[0], 0.0)

    # 1x1 conv == matmul over channels (lane-dense padded N).
    out = jnp.dot(y.astype(w2_ref.dtype), w2_ref[...],
                  preferred_element_type=jnp.float32)
    o_ref[...] = out.astype(o_ref.dtype)


def scnn_decoder(x_nhwc, w1_hwio, bn_gamma, bn_beta, bn_mean, bn_var, w2,
                 eps=1e-5, batch_block=None):
    N, H, W, Cin = x_nhwc.shape
    Cmid = w1_hwio.shape[3]
    NC = w2.shape[1]
    Cmid_p = _round_up(Cmid, 128)
    NC_p = _round_up(NC, 128)

    if batch_block is None:
        batch_block = N                     # single grid step at toy sizes
    assert N % batch_block == 0
    grid_n = N // batch_block
    m_block = batch_block * H * W

    # ---- one-time wrapper-side parameter prep (plain JAX glue) ----------
    scale = bn_gamma / jnp.sqrt(bn_var + eps)                  # (Cmid,)
    bias = (bn_beta - bn_mean * scale).astype(jnp.float32)     # (Cmid,)

    # Fold BN scale into the 3x3 weights, flatten (kw, Cin) -> K, pad Cmid.
    w1f = (w1_hwio * scale[None, None, None, :]).reshape(3, 3 * Cin, Cmid)
    w1f = jnp.pad(w1f, ((0, 0), (0, 0), (0, Cmid_p - Cmid))).astype(jnp.bfloat16)

    bias_p = jnp.pad(bias[None, :], ((0, 0), (0, Cmid_p - Cmid)))

    w2_p = jnp.pad(w2, ((0, Cmid_p - Cmid), (0, NC_p - NC))).astype(jnp.bfloat16)

    # Zero-pad spatial dims for the 'same' 3x3 conv; bf16 for the MXU.
    x_pad = jnp.pad(x_nhwc, ((0, 0), (1, 1), (1, 1), (0, 0))).astype(jnp.bfloat16)

    out2d = pl.pallas_call(
        scnn_decoder_kernel,
        out_shape=jax.ShapeDtypeStruct((N * H * W, NC_p), jnp.float32),
        grid_spec=pltpu.PrefetchScalarGridSpec(
            num_scalar_prefetch=0,
            grid=(grid_n,),
            in_specs=[
                pl.BlockSpec((batch_block, H + 2, W + 2, Cin),
                             lambda b: (b, 0, 0, 0)),
                pl.BlockSpec((3, 3 * Cin, Cmid_p), lambda b: (0, 0, 0)),
                pl.BlockSpec((1, Cmid_p), lambda b: (0, 0)),
                pl.BlockSpec((Cmid_p, NC_p), lambda b: (0, 0)),
            ],
            out_specs=pl.BlockSpec((m_block, NC_p), lambda b: (b, 0)),
        ),
        compiler_params=pltpu.CompilerParams(
            dimension_semantics=("parallel",)),
        # TODO(synk): for real decoder sizes (2048ch, large H*W) tile spatially
        # with a 2-row halo via the index_map and set vmem_limit_bytes
        # (v7x VMEM is 64 MiB) instead of DMAing the whole image per block.
    )(x_pad, w1f, bias_p, w2_p)

    return out2d.reshape(N, H, W, NC_p)[..., :NC]


def reference(x_nhwc, w1_hwio, bn_gamma, bn_beta, bn_mean, bn_var, w2, eps=1e-5):
    y = lax.conv_general_dilated(
        x_nhwc, w1_hwio, window_strides=(1, 1), padding="SAME",
        dimension_numbers=("NHWC", "HWIO", "NHWC"))
    scale = bn_gamma / jnp.sqrt(bn_var + eps)
    y = y * scale + (bn_beta - bn_mean * scale)
    y = jnp.maximum(y, 0.0)
    return jnp.einsum("nhwc,cd->nhwd", y, w2)


if __name__ == "__main__":
    # Small shapes consistent with the module: in_channels=32 -> out_channels=8.
    N, H, W = 2, 8, 8
    in_channels, num_classes = 32, 5
    out_channels = in_channels // 4

    key = jax.random.PRNGKey(0)
    kx, k1, k2, kg, kb, km, kv = jax.random.split(key, 7)

    x = jax.random.normal(kx, (N, H, W, in_channels), jnp.float32)

    # Deterministic parameter init (synthetic, no checkpoint).
    w1 = jax.random.normal(k1, (3, 3, in_channels, out_channels), jnp.float32) * 0.05
    w2 = jax.random.normal(k2, (out_channels, num_classes), jnp.float32) * 0.1
    bn_gamma = 1.0 + 0.1 * jax.random.normal(kg, (out_channels,), jnp.float32)
    bn_beta = 0.1 * jax.random.normal(kb, (out_channels,), jnp.float32)
    bn_mean = 0.1 * jax.random.normal(km, (out_channels,), jnp.float32)
    bn_var = jnp.abs(1.0 + 0.1 * jax.random.normal(kv, (out_channels,), jnp.float32))

    out = scnn_decoder(x, w1, bn_gamma, bn_beta, bn_mean, bn_var, w2)
    out = jax.block_until_ready(out)

    ref = reference(x, w1, bn_gamma, bn_beta, bn_mean, bn_var, w2)
    assert out.shape == (N, H, W, num_classes)
    # bf16 MXU inputs (f32 accumulation) -> looser tolerance than the f32 ref.
    assert jnp.allclose(out, ref, atol=2e-2, rtol=2e-2), "mismatch vs reference"

    print("KERNEL_OK")
</pallas_src>

<mosaic_0001>
module attributes {stable_mosaic.version = 11 : i64} {
  func.func @scnn_decoder_kernel(%arg0: i32, %arg1: memref<2x10x10x32xbf16, #tpu.memory_space<vmem>>, %arg2: memref<3x96x128xbf16, #tpu.memory_space<vmem>>, %arg3: memref<1x128xf32, #tpu.memory_space<vmem>>, %arg4: memref<128x128xbf16, #tpu.memory_space<vmem>>, %arg5: memref<128x128xf32, #tpu.memory_space<vmem>>) attributes {dimension_semantics = [#tpu.dimension_semantics<parallel>], iteration_bounds = array<i64: 1>, scalar_prefetch = 0 : i64, scratch_operands = 0 : i64, tpu.core_type = #tpu.core_type<tc>, window_params = [{transform_indices = @transform_0, window_bounds = array<i64: 2, 10, 10, 32>}, {pipeline_mode = #tpu.pipeline_mode<synchronous>, transform_indices = @transform_1, window_bounds = array<i64: 3, 96, 128>}, {pipeline_mode = #tpu.pipeline_mode<synchronous>, transform_indices = @transform_2, window_bounds = array<i64: 1, 128>}, {pipeline_mode = #tpu.pipeline_mode<synchronous>, transform_indices = @transform_3, window_bounds = array<i64: 128, 128>}, {transform_indices = @transform_4, window_bounds = array<i64: 128, 128>}]} {
    %c0 = arith.constant 0 : index
    %c0_0 = arith.constant 0 : index
    %c0_1 = arith.constant 0 : index
    %c0_2 = arith.constant 0 : index
    %0 = vector.load %arg1[%c0, %c0_0, %c0_1, %c0_2] : memref<2x10x10x32xbf16, #tpu.memory_space<vmem>>, vector<2x10x10x32xbf16>
    %cst = arith.constant 0.000000e+00 : f32
    %1 = vector.broadcast %cst : f32 to vector<128x128xf32>
    %2 = vector.extract_strided_slice %0 {offsets = [0, 0, 0, 0], sizes = [2, 8, 8, 32], strides = [1, 1, 1, 1]} : vector<2x10x10x32xbf16> to vector<2x8x8x32xbf16>
    %3 = vector.extract_strided_slice %0 {offsets = [0, 0, 1, 0], sizes = [2, 8, 8, 32], strides = [1, 1, 1, 1]} : vector<2x10x10x32xbf16> to vector<2x8x8x32xbf16>
    %4 = vector.extract_strided_slice %0 {offsets = [0, 0, 2, 0], sizes = [2, 8, 8, 32], strides = [1, 1, 1, 1]} : vector<2x10x10x32xbf16> to vector<2x8x8x32xbf16>
    %5 = tpu.concatenate %2, %3, %4 in 3 : vector<2x8x8x32xbf16>, vector<2x8x8x32xbf16>, vector<2x8x8x32xbf16> -> vector<2x8x8x96xbf16>
    %6 = vector.shape_cast %5 : vector<2x8x8x96xbf16> to vector<128x96xbf16>
    %c0_3 = arith.constant 0 : index
    %c0_4 = arith.constant 0 : index
    %c0_5 = arith.constant 0 : index
    %7 = vector.load %arg2[%c0_3, %c0_4, %c0_5] : memref<3x96x128xbf16, #tpu.memory_space<vmem>>, vector<1x96x128xbf16>
    %8 = vector.shape_cast %7 : vector<1x96x128xbf16> to vector<96x128xbf16>
    %cst_6 = arith.constant dense<0.000000e+00> : vector<128x128xf32>
    %9 = tpu.matmul %6, %8, %cst_6 {dimension_numbers = #tpu.dot_dimension_numbers<[1], [0], [0], [1], [0, 0, 1, 1], [], []>} : vector<128x96xbf16>, vector<96x128xbf16>, vector<128x128xf32> -> vector<128x128xf32>
    %10 = arith.addf %1, %9 : vector<128x128xf32>
    %11 = vector.extract_strided_slice %0 {offsets = [0, 1, 0, 0], sizes = [2, 8, 8, 32], strides = [1, 1, 1, 1]} : vector<2x10x10x32xbf16> to vector<2x8x8x32xbf16>
    %12 = vector.extract_strided_slice %0 {offsets = [0, 1, 1, 0], sizes = [2, 8, 8, 32], strides = [1, 1, 1, 1]} : vector<2x10x10x32xbf16> to vector<2x8x8x32xbf16>
    %13 = vector.extract_strided_slice %0 {offsets = [0, 1, 2, 0], sizes = [2, 8, 8, 32], strides = [1, 1, 1, 1]} : vector<2x10x10x32xbf16> to vector<2x8x8x32xbf16>
    %14 = tpu.concatenate %11, %12, %13 in 3 : vector<2x8x8x32xbf16>, vector<2x8x8x32xbf16>, vector<2x8x8x32xbf16> -> vector<2x8x8x96xbf16>
    %15 = vector.shape_cast %14 : vector<2x8x8x96xbf16> to vector<128x96xbf16>
    %c1 = arith.constant 1 : index
    %c0_7 = arith.constant 0 : index
    %c0_8 = arith.constant 0 : index
    %16 = vector.load %arg2[%c1, %c0_7, %c0_8] : memref<3x96x128xbf16, #tpu.memory_space<vmem>>, vector<1x96x128xbf16>
    %17 = vector.shape_cast %16 : vector<1x96x128xbf16> to vector<96x128xbf16>
    %cst_9 = arith.constant dense<0.000000e+00> : vector<128x128xf32>
    %18 = tpu.matmul %15, %17, %cst_9 {dimension_numbers = #tpu.dot_dimension_numbers<[1], [0], [0], [1], [0, 0, 1, 1], [], []>} : vector<128x96xbf16>, vector<96x128xbf16>, vector<128x128xf32> -> vector<128x128xf32>
    %19 = arith.addf %10, %18 : vector<128x128xf32>
    %20 = vector.extract_strided_slice %0 {offsets = [0, 2, 0, 0], sizes = [2, 8, 8, 32], strides = [1, 1, 1, 1]} : vector<2x10x10x32xbf16> to vector<2x8x8x32xbf16>
    %21 = vector.extract_strided_slice %0 {offsets = [0, 2, 1, 0], sizes = [2, 8, 8, 32], strides = [1, 1, 1, 1]} : vector<2x10x10x32xbf16> to vector<2x8x8x32xbf16>
    %22 = vector.extract_strided_slice %0 {offsets = [0, 2, 2, 0], sizes = [2, 8, 8, 32], strides = [1, 1, 1, 1]} : vector<2x10x10x32xbf16> to vector<2x8x8x32xbf16>
    %23 = tpu.concatenate %20, %21, %22 in 3 : vector<2x8x8x32xbf16>, vector<2x8x8x32xbf16>, vector<2x8x8x32xbf16> -> vector<2x8x8x96xbf16>
    %24 = vector.shape_cast %23 : vector<2x8x8x96xbf16> to vector<128x96xbf16>
    %c2 = arith.constant 2 : index
    %c0_10 = arith.constant 0 : index
    %c0_11 = arith.constant 0 : index
    %25 = vector.load %arg2[%c2, %c0_10, %c0_11] : memref<3x96x128xbf16, #tpu.memory_space<vmem>>, vector<1x96x128xbf16>
    %26 = vector.shape_cast %25 : vector<1x96x128xbf16> to vector<96x128xbf16>
    %cst_12 = arith.constant dense<0.000000e+00> : vector<128x128xf32>
    %27 = tpu.matmul %24, %26, %cst_12 {dimension_numbers = #tpu.dot_dimension_numbers<[1], [0], [0], [1], [0, 0, 1, 1], [], []>} : vector<128x96xbf16>, vector<96x128xbf16>, vector<128x128xf32> -> vector<128x128xf32>
    %28 = arith.addf %19, %27 : vector<128x128xf32>
    %c0_13 = arith.constant 0 : index
    %c0_14 = arith.constant 0 : index
    %29 = vector.load %arg3[%c0_13, %c0_14] : memref<1x128xf32, #tpu.memory_space<vmem>>, vector<1x128xf32>
    %30 = vector.shape_cast %29 : vector<1x128xf32> to vector<128xf32>
    %31 = vector.shape_cast %30 : vector<128xf32> to vector<1x128xf32>
    %32 = vector.broadcast %31 : vector<1x128xf32> to vector<128x128xf32>
    %33 = arith.addf %28, %32 : vector<128x128xf32>
    %cst_15 = arith.constant 0.000000e+00 : f32
    %34 = vector.broadcast %cst_15 : f32 to vector<128x128xf32>
    %35 = arith.maximumf %33, %34 : vector<128x128xf32>
    %36 = arith.truncf %35 : vector<128x128xf32> to vector<128x128xbf16>
    %c0_16 = arith.constant 0 : index
    %c0_17 = arith.constant 0 : index
    %37 = vector.load %arg4[%c0_16, %c0_17] : memref<128x128xbf16, #tpu.memory_space<vmem>>, vector<128x128xbf16>
    %cst_18 = arith.constant dense<0.000000e+00> : vector<128x128xf32>
    %38 = tpu.matmul %36, %37, %cst_18 {dimension_numbers = #tpu.dot_dimension_numbers<[1], [0], [0], [1], [0, 0, 1, 1], [], []>} : vector<128x128xbf16>, vector<128x128xbf16>, vector<128x128xf32> -> vector<128x128xf32>
    %c0_19 = arith.constant 0 : index
    %c0_20 = arith.constant 0 : index
    %39 = vector.load %arg5[%c0_19, %c0_20] : memref<128x128xf32, #tpu.memory_space<vmem>>, vector<128x128xf32>
    tpu.vector_store %arg5[%c0_19, %c0_20], %38 {strides = array<i32>} : memref<128x128xf32, #tpu.memory_space<vmem>>, vector<128x128xf32>,
    return
  }
  func.func @transform_0(%arg0: i32) -> (i32, i32, i32, i32) {
    %c0_i32 = arith.constant 0 : i32
    %c0_i32_0 = arith.constant 0 : i32
    %c0_i32_1 = arith.constant 0 : i32
    %c0_i32_2 = arith.constant 0 : i32
    return %arg0, %c0_i32, %c0_i32_0, %c0_i32_1 : i32, i32, i32, i32
  }
  func.func @transform_1(%arg0: i32) -> (i32, i32, i32) {
    %c0_i32 = arith.constant 0 : i32
    %c0_i32_0 = arith.constant 0 : i32
    %c0_i32_1 = arith.constant 0 : i32
    %c0_i32_2 = arith.constant 0 : i32
    return %c0_i32, %c0_i32_0, %c0_i32_1 : i32, i32, i32
  }
  func.func @transform_2(%arg0: i32) -> (i32, i32) {
    %c0_i32 = arith.constant 0 : i32
    %c0_i32_0 = arith.constant 0 : i32
    %c0_i32_1 = arith.constant 0 : i32
    return %c0_i32, %c0_i32_0 : i32, i32
  }
  func.func @transform_3(%arg0: i32) -> (i32, i32) {
    %c0_i32 = arith.constant 0 : i32
    %c0_i32_0 = arith.constant 0 : i32
    %c0_i32_1 = arith.constant 0 : i32
    return %c0_i32, %c0_i32_0 : i32, i32
  }
  func.func @transform_4(%arg0: i32) -> (i32, i32) {
    %c0_i32 = arith.constant 0 : i32
    %c0_i32_0 = arith.constant 0 : i32
    return %arg0, %c0_i32 : i32, i32
  }
}

</mosaic_0001>

<llo_original>
// kernel: tpu_custom_call.1
$region0: #{tpu_custom_call.1}
  #allocation0 [shape = 'u32[]', space=smem, size = 0x4, offset = 0x4, fixed_abs, tag = 'smem constant byte address 0x4 - core index']
  #allocation1 [shape = 'u32[72,128]{1,0:T(1,128)}', space=vmem, size = 0x9000, scoped, tag = 'internal scratch']
  %s0 = inlined_call_operand.vmem [shape: bf16[2,10,10,32], index: 0, kind: input, shape index: {}]
  %s1 = inlined_call_operand.vmem [shape: bf16[3,96,128], index: 1, kind: input, shape index: {}]
  %s2 = inlined_call_operand.vmem [shape: f32[1,128], index: 2, kind: input, shape index: {}]
  %s3 = inlined_call_operand.vmem [shape: bf16[128,128], index: 3, kind: input, shape index: {}]
  %s4 = inlined_call_operand.hbm [shape: f32[128,128], index: 4, kind: output, shape index: {}]
  %s5 = sld [smem:[#allocation0]]
  $region26: #{tpu_custom_call.1} parent=0
    _
  %s7 = ssub.s32 1, %s5
  %s8 = scalar_select 0, %s7, %s5
  $region1: #{tpu_custom_call.1} parent=0
    #allocation2 [shape = 'u8[65536]{0}', space=vmem, size = 0x10000, scoped, tag = 'output window, operand 0, single buffered']
    #allocation3 [shape = 's32[1]{0}', space=sflag, size = 0x4, scoped, tag = 'scoped memory for tpu_custom_call.1']
    %9 = vsyncpa [#allocation3], 0
    // Predicated region
    $region2: #{tpu_custom_call.1} parent=1 // pred_check
      _
    $region3: #{tpu_custom_call.1} parent=1 // pred_check_branch
      %11 = sbr.rel (0) target = $region5
    $region4: #{tpu_custom_call.1} parent=1 // pred_region
      _
    $region5: #{tpu_custom_call.1} parent=1 // pred_fallthru
      _
    // Predicated region
    $region6: #{tpu_custom_call.1} parent=1 // pred_check
      _
    $region7: #{tpu_custom_call.1} parent=1 // pred_check_branch
      %13 = sbr.rel (0) target = $region9
    $region8: #{tpu_custom_call.1} parent=1 // pred_region
      _
    $region9: #{tpu_custom_call.1} parent=1 // pred_fallthru
      _
    // Predicated region
    $region10: #{tpu_custom_call.1} parent=1 // pred_check
      _
    $region11: #{tpu_custom_call.1} parent=1 // pred_check_branch
      %15 = sbr.rel (0) target = $region13
    $region12: #{tpu_custom_call.1} parent=1 // pred_region
      _
    $region13: #{tpu_custom_call.1} parent=1 // pred_fallthru
      _
    // Predicated region
    $region14: #{tpu_custom_call.1} parent=1 // pred_check
      _
    $region15: #{tpu_custom_call.1} parent=1 // pred_check_branch
      %17 = sbr.rel (0) target = $region17
    $region16: #{tpu_custom_call.1} parent=1 // pred_region
      _
    $region17: #{tpu_custom_call.1} parent=1 // pred_fallthru
      _
    %v19 = vld [vmem:[%s0] sm:$0xf]
    %v20 = vld [vmem:[%s0 + $0x4] sm:$0x1]
    %v21 = vld [vmem:[%s0 + $0x8] sm:$0xf]
    %v22 = vld [vmem:[%s0 + $0xc] sm:$0x1]
    %v23 = vld [vmem:[%s0 + $0x10] sm:$0xf]
    %v24 = vld [vmem:[%s0 + $0x14] sm:$0x1]
    %v25 = vld [vmem:[%s0 + $0x18] sm:$0xf]
    %v26 = vld [vmem:[%s0 + $0x1c] sm:$0x1]
    %v27 = vld [vmem:[%s0 + $0x20] sm:$0xf]
    %v28 = vld [vmem:[%s0 + $0x24] sm:$0x1]
    %v29 = vld [vmem:[%s0 + $0x28] sm:$0xf]
    %v30 = vld [vmem:[%s0 + $0x2c] sm:$0x1]
    %v31 = vld [vmem:[%s0 + $0x30] sm:$0xf]
    %v32 = vld [vmem:[%s0 + $0x34] sm:$0x1]
    %v33 = vld [vmem:[%s0 + $0x38] sm:$0xf]
    %v34 = vld [vmem:[%s0 + $0x3c] sm:$0x1]
    %v35 = vld [vmem:[%s0 + $0x40] sm:$0xf]
    %v36 = vld [vmem:[%s0 + $0x44] sm:$0x1]
    %v37 = vld [vmem:[%s0 + $0x48] sm:$0xf]
    %v38 = vld [vmem:[%s0 + $0x4c] sm:$0x1]
    %v39 = vld [vmem:[%s0 + $0x50] sm:$0xf]
    %v40 = vld [vmem:[%s0 + $0x54] sm:$0x1]
    %v41 = vld [vmem:[%s0 + $0x58] sm:$0xf]
    %v42 = vld [vmem:[%s0 + $0x5c] sm:$0x1]
    %v43 = vld [vmem:[%s0 + $0x60] sm:$0xf]
    %v44 = vld [vmem:[%s0 + $0x64] sm:$0x1]
    %v45 = vld [vmem:[%s0 + $0x68] sm:$0xf]
    %v46 = vld [vmem:[%s0 + $0x6c] sm:$0x1]
    %v47 = vld [vmem:[%s0 + $0x70] sm:$0xf]
    %v48 = vld [vmem:[%s0 + $0x74] sm:$0x1]
    %v49 = vld [vmem:[%s0 + $0x78] sm:$0xf]
    %v50 = vld [vmem:[%s0 + $0x7c] sm:$0x1]
    %v51 = vld [vmem:[%s0 + $0x80] sm:$0xf]
    %v52 = vld [vmem:[%s0 + $0x84] sm:$0x1]
    %v53 = vld [vmem:[%s0 + $0x88] sm:$0xf]
    %v54 = vld [vmem:[%s0 + $0x8c] sm:$0x1]
    %v55 = vld [vmem:[%s0 + $0x90] sm:$0xf]
    %v56 = vld [vmem:[%s0 + $0x94] sm:$0x1]
    %v57 = vld [vmem:[%s0 + $0x98] sm:$0xf]
    %v58 = vld [vmem:[%s0 + $0x9c] sm:$0x1]
    %v91 = vunpack.c.l.b16 %v19
    %v92 = vunpack.c.l.b16 %v20
    %v93 = vunpack.c.l.b16 %v21
    %v94 = vunpack.c.l.b16 %v22
    %v95 = vunpack.c.l.b16 %v23
    %v96 = vunpack.c.l.b16 %v24
    %v97 = vunpack.c.l.b16 %v25
    %v98 = vunpack.c.l.b16 %v26
    %v99 = vunpack.c.l.b16 %v27
    %v100 = vunpack.c.l.b16 %v28
    %v101 = vunpack.c.l.b16 %v29
    %v102 = vunpack.c.l.b16 %v30
    %v103 = vunpack.c.l.b16 %v31
    %v104 = vunpack.c.l.b16 %v32
    %v105 = vunpack.c.l.b16 %v33
    %v106 = vunpack.c.l.b16 %v34
    %v107 = vunpack.c.l.b16 %v39
    %v108 = vunpack.c.l.b16 %v40
    %v109 = vunpack.c.l.b16 %v41
    %v110 = vunpack.c.l.b16 %v42
    %v111 = vunpack.c.l.b16 %v43
    %v112 = vunpack.c.l.b16 %v44
    %v113 = vunpack.c.l.b16 %v45
    %v114 = vunpack.c.l.b16 %v46
    %v115 = vunpack.c.l.b16 %v47
    %v116 = vunpack.c.l.b16 %v48
    %v117 = vunpack.c.l.b16 %v49
    %v118 = vunpack.c.l.b16 %v50
    %v119 = vunpack.c.l.b16 %v51
    %v120 = vunpack.c.l.b16 %v52
    %v121 = vunpack.c.l.b16 %v53
    %v122 = vunpack.c.l.b16 %v54
    %v123 = vpack.c.b16 %v92, %v91
    %v124 = vpack.c.b16 %v94, %v93
    %v125 = vpack.c.b16 %v96, %v95
    %v126 = vpack.c.b16 %v98, %v97
    %v127 = vpack.c.b16 %v100, %v99
    %v128 = vpack.c.b16 %v102, %v101
    %v129 = vpack.c.b16 %v104, %v103
    %v130 = vpack.c.b16 %v106, %v105
    %v131 = vpack.c.b16 %v108, %v107
    %v132 = vpack.c.b16 %v110, %v109
    %v133 = vpack.c.b16 %v112, %v111
    %v134 = vpack.c.b16 %v114, %v113
    %v135 = vpack.c.b16 %v116, %v115
    %v136 = vpack.c.b16 %v118, %v117
    %v137 = vpack.c.b16 %v120, %v119
    %v138 = vpack.c.b16 %v122, %v121
    %v140 = vshrl.u32 %v123, 16
    %v142 = vshll.u32 %v123, 16
    %v144 = vrot.slane %v142, 1
    %v145 = vor.u32 %v140, %v144
    %v147 = vshrl.u32 %v124, 16
    %v149 = vshll.u32 %v124, 16
    %v151 = vrot.slane %v149, 1
    %v152 = vor.u32 %v147, %v151
    %v154 = vshrl.u32 %v125, 16
    %v156 = vshll.u32 %v125, 16
    %v158 = vrot.slane %v156, 1
    %v159 = vor.u32 %v154, %v158
    %v161 = vshrl.u32 %v126, 16
    %v163 = vshll.u32 %v126, 16
    %v165 = vrot.slane %v163, 1
    %v166 = vor.u32 %v161, %v165
    %v168 = vshrl.u32 %v127, 16
    %v170 = vshll.u32 %v127, 16
    %v172 = vrot.slane %v170, 1
    %v173 = vor.u32 %v168, %v172
    %v175 = vshrl.u32 %v128, 16
    %v177 = vshll.u32 %v128, 16
    %v179 = vrot.slane %v177, 1
    %v180 = vor.u32 %v175, %v179
    %v182 = vshrl.u32 %v129, 16
    %v184 = vshll.u32 %v129, 16
    %v186 = vrot.slane %v184, 1
    %v187 = vor.u32 %v182, %v186
    %v189 = vshrl.u32 %v130, 16
    %v191 = vshll.u32 %v130, 16
    %v193 = vrot.slane %v191, 1
    %v194 = vor.u32 %v189, %v193
    %v196 = vshrl.u32 %v131, 16
    %v198 = vshll.u32 %v131, 16
    %v200 = vrot.slane %v198, 1
    %v201 = vor.u32 %v196, %v200
    %v203 = vshrl.u32 %v132, 16
    %v205 = vshll.u32 %v132, 16
    %v207 = vrot.slane %v205, 1
    %v208 = vor.u32 %v203, %v207
    %v210 = vshrl.u32 %v133, 16
    %v212 = vshll.u32 %v133, 16
    %v214 = vrot.slane %v212, 1
    %v215 = vor.u32 %v210, %v214
    %v217 = vshrl.u32 %v134, 16
    %v219 = vshll.u32 %v134, 16
    %v221 = vrot.slane %v219, 1
    %v222 = vor.u32 %v217, %v221
    %v224 = vshrl.u32 %v135, 16
    %v226 = vshll.u32 %v135, 16
    %v228 = vrot.slane %v226, 1
    %v229 = vor.u32 %v224, %v228
    %v231 = vshrl.u32 %v136, 16
    %v233 = vshll.u32 %v136, 16
    %v235 = vrot.slane %v233, 1
    %v236 = vor.u32 %v231, %v235
    %v238 = vshrl.u32 %v137, 16
    %v240 = vshll.u32 %v137, 16
    %v242 = vrot.slane %v240, 1
    %v243 = vor.u32 %v238, %v242
    %v245 = vshrl.u32 %v138, 16
    %v247 = vshll.u32 %v138, 16
    %v249 = vrot.slane %v247, 1
    %v250 = vor.u32 %v245, %v249
    %251 = vrot.lane.b32.xlu0 %v145, 32
    %v252 = vpop.permute.xlu0 %251
    %253 = vrot.lane.b32.xlu0 %v152, 32
    %v254 = vpop.permute.xlu0 %253
    %255 = vrot.lane.b32.xlu0 %v159, 32
    %v256 = vpop.permute.xlu0 %255
    %257 = vrot.lane.b32.xlu0 %v166, 32
    %v258 = vpop.permute.xlu0 %257
    %259 = vrot.lane.b32.xlu0 %v173, 32
    %v260 = vpop.permute.xlu0 %259
    %261 = vrot.lane.b32.xlu0 %v180, 32
    %v262 = vpop.permute.xlu0 %261
    %263 = vrot.lane.b32.xlu0 %v187, 32
    %v264 = vpop.permute.xlu0 %263
    %265 = vrot.lane.b32.xlu0 %v194, 32
    %v266 = vpop.permute.xlu0 %265
    %267 = vrot.lane.b32.xlu0 %v201, 32
    %v268 = vpop.permute.xlu0 %267
    %269 = vrot.lane.b32.xlu0 %v208, 32
    %v270 = vpop.permute.xlu0 %269
    %271 = vrot.lane.b32.xlu0 %v215, 32
    %v272 = vpop.permute.xlu0 %271
    %273 = vrot.lane.b32.xlu0 %v222, 32
    %v274 = vpop.permute.xlu0 %273
    %275 = vrot.lane.b32.xlu0 %v229, 32
    %v276 = vpop.permute.xlu0 %275
    %277 = vrot.lane.b32.xlu0 %v236, 32
    %v278 = vpop.permute.xlu0 %277
    %279 = vrot.lane.b32.xlu0 %v243, 32
    %v280 = vpop.permute.xlu0 %279
    %281 = vrot.lane.b32.xlu0 %v250, 32
    %v282 = vpop.permute.xlu0 %281
    %v283 = vrot.slane %v123, 1
    %v284 = vrot.slane %v124, 1
    %v285 = vrot.slane %v125, 1
    %v286 = vrot.slane %v126, 1
    %v287 = vrot.slane %v127, 1
    %v288 = vrot.slane %v128, 1
    %v289 = vrot.slane %v129, 1
    %v290 = vrot.slane %v130, 1
    %v291 = vrot.slane %v131, 1
    %v292 = vrot.slane %v132, 1
    %v293 = vrot.slane %v133, 1
    %v294 = vrot.slane %v134, 1
    %v295 = vrot.slane %v135, 1
    %v296 = vrot.slane %v136, 1
    %v297 = vrot.slane %v137, 1
    %v298 = vrot.slane %v138, 1
    %299 = vrot.lane.b32.xlu0 %v283, 64
    %v300 = vpop.permute.xlu0 %299
    %301 = vrot.lane.b32.xlu0 %v284, 64
    %v302 = vpop.permute.xlu0 %301
    %303 = vrot.lane.b32.xlu0 %v285, 64
    %v304 = vpop.permute.xlu0 %303
    %305 = vrot.lane.b32.xlu0 %v286, 64
    %v306 = vpop.permute.xlu0 %305
    %307 = vrot.lane.b32.xlu0 %v287, 64
    %v308 = vpop.permute.xlu0 %307
    %309 = vrot.lane.b32.xlu0 %v288, 64
    %v310 = vpop.permute.xlu0 %309
    %311 = vrot.lane.b32.xlu0 %v289, 64
    %v312 = vpop.permute.xlu0 %311
    %313 = vrot.lane.b32.xlu0 %v290, 64
    %v314 = vpop.permute.xlu0 %313
    %315 = vrot.lane.b32.xlu0 %v291, 64
    %v316 = vpop.permute.xlu0 %315
    %317 = vrot.lane.b32.xlu0 %v292, 64
    %v318 = vpop.permute.xlu0 %317
    %319 = vrot.lane.b32.xlu0 %v293, 64
    %v320 = vpop.permute.xlu0 %319
    %321 = vrot.lane.b32.xlu0 %v294, 64
    %v322 = vpop.permute.xlu0 %321
    %323 = vrot.lane.b32.xlu0 %v295, 64
    %v324 = vpop.permute.xlu0 %323
    %325 = vrot.lane.b32.xlu0 %v296, 64
    %v326 = vpop.permute.xlu0 %325
    %327 = vrot.lane.b32.xlu0 %v297, 64
    %v328 = vpop.permute.xlu0 %327
    %329 = vrot.lane.b32.xlu0 %v298, 64
    %v330 = vpop.permute.xlu0 %329
    %vm331 = vcmask 261120
    %v334 = vsel %vm331, %v19, %v252
    %v337 = vsel %vm331, %v21, %v254
    %v340 = vsel %vm331, %v23, %v256
    %v343 = vsel %vm331, %v25, %v258
    %v346 = vsel %vm331, %v27, %v260
    %v349 = vsel %vm331, %v29, %v262
    %v352 = vsel %vm331, %v31, %v264
    %v355 = vsel %vm331, %v33, %v266
    %v358 = vsel %vm331, %v39, %v268
    %v361 = vsel %vm331, %v41, %v270
    %v364 = vsel %vm331, %v43, %v272
    %v367 = vsel %vm331, %v45, %v274
    %v370 = vsel %vm331, %v47, %v276
    %v373 = vsel %vm331, %v49, %v278
    %v376 = vsel %vm331, %v51, %v280
    %v379 = vsel %vm331, %v53, %v282
    %vm380 = vcmask 523264
    %v382 = vsel %vm380, %v334, %v300
    %v384 = vsel %vm380, %v337, %v302
    %v386 = vsel %vm380, %v340, %v304
    %v388 = vsel %vm380, %v343, %v306
    %v390 = vsel %vm380, %v346, %v308
    %v392 = vsel %vm380, %v349, %v310
    %v394 = vsel %vm380, %v352, %v312
    %v396 = vsel %vm380, %v355, %v314
    %v398 = vsel %vm380, %v358, %v316
    %v400 = vsel %vm380, %v361, %v318
    %v402 = vsel %vm380, %v364, %v320
    %v404 = vsel %vm380, %v367, %v322
    %v406 = vsel %vm380, %v370, %v324
    %v408 = vsel %vm380, %v373, %v326
    %v410 = vsel %vm380, %v376, %v328
    %v412 = vsel %vm380, %v379, %v330
    %v413 = vld [vmem:[%s1] sm:$0xf]
    %v414 = vld [vmem:[%s1 + $0x4] sm:$0xf]
    %v415 = vld [vmem:[%s1 + $0x8] sm:$0xf]
    %v416 = vld [vmem:[%s1 + $0xc] sm:$0xf]
    %v417 = vld [vmem:[%s1 + $0x10] sm:$0xf]
    %v418 = vld [vmem:[%s1 + $0x14] sm:$0xf]
    %v419 = vld [vmem:[%s1 + $0x18] sm:$0xf]
    %v420 = vld [vmem:[%s1 + $0x1c] sm:$0xf]
    %v421 = vld [vmem:[%s1 + $0x20] sm:$0xf]
    %v422 = vld [vmem:[%s1 + $0x24] sm:$0xf]
    %v423 = vld [vmem:[%s1 + $0x28] sm:$0xf]
    %v424 = vld [vmem:[%s1 + $0x2c] sm:$0xf]
    %v429 = vunpack.c.l.b16 %v35
    %v430 = vunpack.c.l.b16 %v36
    %v431 = vunpack.c.l.b16 %v55
    %v432 = vunpack.c.l.b16 %v56
    %v433 = vpack.c.b16 %v430, %v429
    %v434 = vpack.c.b16 %v432, %v431
    %v436 = vshrl.u32 %v433, 16
    %v438 = vshll.u32 %v433, 16
    %v440 = vrot.slane %v438, 1
    %v441 = vor.u32 %v436, %v440
    %v443 = vshrl.u32 %v434, 16
    %v445 = vshll.u32 %v434, 16
    %v447 = vrot.slane %v445, 1
    %v448 = vor.u32 %v443, %v447
    %449 = vrot.lane.b32.xlu0 %v441, 32
    %v450 = vpop.permute.xlu0 %449
    %451 = vrot.lane.b32.xlu0 %v448, 32
    %v452 = vpop.permute.xlu0 %451
    %v453 = vrot.slane %v433, 1
    %v454 = vrot.slane %v434, 1
    %455 = vrot.lane.b32.xlu0 %v453, 64
    %v456 = vpop.permute.xlu0 %455
    %457 = vrot.lane.b32.xlu0 %v454, 64
    %v458 = vpop.permute.xlu0 %457
    %v461 = vsel %vm331, %v35, %v450
    %v464 = vsel %vm331, %v55, %v452
    %v466 = vsel %vm380, %v461, %v456
    %v468 = vsel %vm380, %v464, %v458
    %s469 = scalar_lea.vmem %s1, 48
    %v470 = vld [vmem:[%s469] sm:$0xf]
    %v471 = vld [vmem:[%s469 + $0x4] sm:$0xf]
    %v472 = vld [vmem:[%s469 + $0x8] sm:$0xf]
    %v473 = vld [vmem:[%s469 + $0xc] sm:$0xf]
    %v474 = vld [vmem:[%s469 + $0x10] sm:$0xf]
    %v475 = vld [vmem:[%s469 + $0x14] sm:$0xf]
    %v476 = vld [vmem:[%s469 + $0x18] sm:$0xf]
    %v477 = vld [vmem:[%s469 + $0x1c] sm:$0xf]
    %v478 = vld [vmem:[%s469 + $0x20] sm:$0xf]
    %v479 = vld [vmem:[%s469 + $0x24] sm:$0xf]
    %v480 = vld [vmem:[%s469 + $0x28] sm:$0xf]
    %v481 = vld [vmem:[%s469 + $0x2c] sm:$0xf]
    %v498 = vunpack.c.l.b16 %v384
    %v499 = vunpack.c.l.b16 %v386
    %v500 = vunpack.c.l.b16 %v388
    %v501 = vunpack.c.l.b16 %v390
    %v502 = vunpack.c.l.b16 %v392
    %v503 = vunpack.c.l.b16 %v394
    %v504 = vunpack.c.l.b16 %v396
    %v505 = vunpack.c.l.b16 %v466
    %v506 = vunpack.c.l.b16 %v400
    %v507 = vunpack.c.l.b16 %v402
    %v508 = vunpack.c.l.b16 %v404
    %v509 = vunpack.c.l.b16 %v406
    %v510 = vunpack.c.l.b16 %v408
    %v511 = vunpack.c.l.b16 %v410
    %v512 = vunpack.c.l.b16 %v412
    %v513 = vunpack.c.l.b16 %v468
    %v514 = vpack.c.b16 %v499, %v498
    %v515 = vpack.c.b16 %v501, %v500
    %v516 = vpack.c.b16 %v503, %v502
    %v517 = vpack.c.b16 %v505, %v504
    %v518 = vpack.c.b16 %v507, %v506
    %v519 = vpack.c.b16 %v509, %v508
    %v520 = vpack.c.b16 %v511, %v510
    %v521 = vpack.c.b16 %v513, %v512
    %v534 = vunpack.c.l.b16 %v470
    %v535 = vunpack.c.l.b16 %v471
    %v536 = vunpack.c.l.b16 %v472
    %v537 = vunpack.c.l.b16 %v473
    %v538 = vunpack.c.l.b16 %v474
    %v539 = vunpack.c.l.b16 %v475
    %v540 = vunpack.c.l.b16 %v476
    %v541 = vunpack.c.l.b16 %v477
    %v542 = vunpack.c.l.b16 %v478
    %v543 = vunpack.c.l.b16 %v479
    %v544 = vunpack.c.l.b16 %v480
    %v545 = vunpack.c.l.b16 %v481
    %v546 = vpack.c.b16 %v535, %v534
    %v547 = vpack.c.b16 %v537, %v536
    %v548 = vpack.c.b16 %v539, %v538
    %v549 = vpack.c.b16 %v541, %v540
    %v550 = vpack.c.b16 %v543, %v542
    %v551 = vpack.c.b16 %v545, %v544
    %vm558 = vcmask 785408
    %v560 = vsel %vm558, %v514, 0
    %v563 = vsel %vm558, %v515, 0
    %v566 = vsel %vm558, %v516, 0
    %v569 = vsel %vm558, %v517, 0
    %v572 = vsel %vm558, %v518, 0
    %v575 = vsel %vm558, %v519, 0
    %v578 = vsel %vm558, %v520, 0
    %v581 = vsel %vm558, %v521, 0
    %583 = vmatpush.bf16.msra.mxu0 0
    %584 = vmatpush.bf16.msra.mxu0 0
    %585 = vmatpush.bf16.msra.mxu0 %v551
    %586 = vmatpush.bf16.msra.mxu0 %v550
    %587 = vmatpush.bf16.msra.mxu0 %v549
    %588 = vmatpush.bf16.msra.mxu0 %v548
    %589 = vmatpush.bf16.msra.mxu0 %v547
    %590 = vmatpush.bf16.msra.mxu0 %v546
    %591 = vmatmul.bf16.gmra.mxu0 %v560
    %v592 = vpop.f32.mrf.mxu0
    %v593 = vadd.f32 0.0, %v592
    %v594 = vpop.f32.mrf.mxu0
    %v595 = vadd.f32 0.0, %v594
    %596 = vmatmul.bf16.gmra.mxu0 %v563
    %v597 = vpop.f32.mrf.mxu0
    %v598 = vadd.f32 0.0, %v597
    %v599 = vpop.f32.mrf.mxu0
    %v600 = vadd.f32 0.0, %v599
    %601 = vmatmul.bf16.gmra.mxu0 %v566
    %v602 = vpop.f32.mrf.mxu0
    %v603 = vadd.f32 0.0, %v602
    %v604 = vpop.f32.mrf.mxu0
    %v605 = vadd.f32 0.0, %v604
    %606 = vmatmul.bf16.gmra.mxu0 %v569
    %v607 = vpop.f32.mrf.mxu0
    %v608 = vadd.f32 0.0, %v607
    %v609 = vpop.f32.mrf.mxu0
    %v610 = vadd.f32 0.0, %v609
    %611 = vmatmul.bf16.gmra.mxu0 %v572
    %v612 = vpop.f32.mrf.mxu0
    %v613 = vadd.f32 0.0, %v612
    %v614 = vpop.f32.mrf.mxu0
    %v615 = vadd.f32 0.0, %v614
    %616 = vmatmul.bf16.gmra.mxu0 %v575
    %v617 = vpop.f32.mrf.mxu0
    %v618 = vadd.f32 0.0, %v617
    %v619 = vpop.f32.mrf.mxu0
    %v620 = vadd.f32 0.0, %v619
    %621 = vmatmul.bf16.gmra.mxu0 %v578
    %v622 = vpop.f32.mrf.mxu0
    %v623 = vadd.f32 0.0, %v622
    %v624 = vpop.f32.mrf.mxu0
    %v625 = vadd.f32 0.0, %v624
    %626 = vmatmul.bf16.gmra.mxu0 %v581
    %v627 = vpop.f32.mrf.mxu0
    %v628 = vadd.f32 0.0, %v627
    %v629 = vpop.f32.mrf.mxu0
    %v630 = vadd.f32 0.0, %v629
    %631 = vdwg.mxu0
    %v634 = vunpack.c.l.b16 %v382
    %v635 = vunpack.c.l.b16 %v398
    %v636 = vpack.c.b16 %v498, %v634
    %v637 = vpack.c.b16 %v500, %v499
    %v638 = vpack.c.b16 %v502, %v501
    %v639 = vpack.c.b16 %v504, %v503
    %v640 = vpack.c.b16 %v506, %v635
    %v641 = vpack.c.b16 %v508, %v507
    %v642 = vpack.c.b16 %v510, %v509
    %v643 = vpack.c.b16 %v512, %v511
    %v656 = vunpack.c.l.b16 %v413
    %v657 = vunpack.c.l.b16 %v414
    %v658 = vunpack.c.l.b16 %v415
    %v659 = vunpack.c.l.b16 %v416
    %v660 = vunpack.c.l.b16 %v417
    %v661 = vunpack.c.l.b16 %v418
    %v662 = vunpack.c.l.b16 %v419
    %v663 = vunpack.c.l.b16 %v420
    %v664 = vunpack.c.l.b16 %v421
    %v665 = vunpack.c.l.b16 %v422
    %v666 = vunpack.c.l.b16 %v423
    %v667 = vunpack.c.l.b16 %v424
    %v668 = vpack.c.b16 %v657, %v656
    %v669 = vpack.c.b16 %v659, %v658
    %v670 = vpack.c.b16 %v661, %v660
    %v671 = vpack.c.b16 %v663, %v662
    %v672 = vpack.c.b16 %v665, %v664
    %v673 = vpack.c.b16 %v667, %v666
    %v681 = vsel %vm558, %v636, 0
    %v684 = vsel %vm558, %v637, 0
    %v687 = vsel %vm558, %v638, 0
    %v690 = vsel %vm558, %v639, 0
    %v693 = vsel %vm558, %v640, 0
    %v696 = vsel %vm558, %v641, 0
    %v699 = vsel %vm558, %v642, 0
    %v702 = vsel %vm558, %v643, 0
    %704 = vmatpush.bf16.msra.mxu0 0
    %705 = vmatpush.bf16.msra.mxu0 0
    %706 = vmatpush.bf16.msra.mxu0 %v673
    %707 = vmatpush.bf16.msra.mxu0 %v672
    %708 = vmatpush.bf16.msra.mxu0 %v671
    %709 = vmatpush.bf16.msra.mxu0 %v670
    %710 = vmatpush.bf16.msra.mxu0 %v669
    %711 = vmatpush.bf16.msra.mxu0 %v668
    %712 = vmatmul.bf16.gmra.mxu0 %v681
    %v713 = vpop.f32.mrf.mxu0
    %v714 = vadd.f32 %v593, %v713
    %v715 = vpop.f32.mrf.mxu0
    %v716 = vadd.f32 %v595, %v715
    %717 = vmatmul.bf16.gmra.mxu0 %v684
    %v718 = vpop.f32.mrf.mxu0
    %v719 = vadd.f32 %v598, %v718
    %v720 = vpop.f32.mrf.mxu0
    %v721 = vadd.f32 %v600, %v720
    %722 = vmatmul.bf16.gmra.mxu0 %v687
    %v723 = vpop.f32.mrf.mxu0
    %v724 = vadd.f32 %v603, %v723
    %v725 = vpop.f32.mrf.mxu0
    %v726 = vadd.f32 %v605, %v725
    %727 = vmatmul.bf16.gmra.mxu0 %v690
    %v728 = vpop.f32.mrf.mxu0
    %v729 = vadd.f32 %v608, %v728
    %v730 = vpop.f32.mrf.mxu0
    %v731 = vadd.f32 %v610, %v730
    %732 = vmatmul.bf16.gmra.mxu0 %v693
    %v733 = vpop.f32.mrf.mxu0
    %v734 = vadd.f32 %v613, %v733
    %v735 = vpop.f32.mrf.mxu0
    %v736 = vadd.f32 %v615, %v735
    %737 = vmatmul.bf16.gmra.mxu0 %v696
    %v738 = vpop.f32.mrf.mxu0
    %v739 = vadd.f32 %v618, %v738
    %v740 = vpop.f32.mrf.mxu0
    %v741 = vadd.f32 %v620, %v740
    %742 = vmatmul.bf16.gmra.mxu0 %v699
    %v743 = vpop.f32.mrf.mxu0
    %v744 = vadd.f32 %v623, %v743
    %v745 = vpop.f32.mrf.mxu0
    %v746 = vadd.f32 %v625, %v745
    %747 = vmatmul.bf16.gmra.mxu0 %v702
    %v748 = vpop.f32.mrf.mxu0
    %v749 = vadd.f32 %v628, %v748
    %v750 = vpop.f32.mrf.mxu0
    %v751 = vadd.f32 %v630, %v750
    %752 = vdwg.mxu0
    %v757 = vunpack.c.l.b16 %v37
    %v758 = vunpack.c.l.b16 %v38
    %v759 = vunpack.c.l.b16 %v57
    %v760 = vunpack.c.l.b16 %v58
    %v761 = vpack.c.b16 %v758, %v757
    %v762 = vpack.c.b16 %v760, %v759
    %v764 = vshrl.u32 %v761, 16
    %v766 = vshll.u32 %v761, 16
    %v768 = vrot.slane %v766, 1
    %v769 = vor.u32 %v764, %v768
    %v771 = vshrl.u32 %v762, 16
    %v773 = vshll.u32 %v762, 16
    %v775 = vrot.slane %v773, 1
    %v776 = vor.u32 %v771, %v775
    %777 = vrot.lane.b32.xlu0 %v769, 32
    %v778 = vpop.permute.xlu0 %777
    %779 = vrot.lane.b32.xlu0 %v776, 32
    %v780 = vpop.permute.xlu0 %779
    %v781 = vrot.slane %v761, 1
    %v782 = vrot.slane %v762, 1
    %783 = vrot.lane.b32.xlu0 %v781, 64
    %v784 = vpop.permute.xlu0 %783
    %785 = vrot.lane.b32.xlu0 %v782, 64
    %v786 = vpop.permute.xlu0 %785
    %v789 = vsel %vm331, %v37, %v778
    %v792 = vsel %vm331, %v57, %v780
    %v794 = vsel %vm380, %v789, %v784
    %v796 = vsel %vm380, %v792, %v786
    %s797 = scalar_lea.vmem %s1, 96
    %v798 = vld [vmem:[%s797] sm:$0xf]
    %v799 = vld [vmem:[%s797 + $0x4] sm:$0xf]
    %v800 = vld [vmem:[%s797 + $0x8] sm:$0xf]
    %v801 = vld [vmem:[%s797 + $0xc] sm:$0xf]
    %v802 = vld [vmem:[%s797 + $0x10] sm:$0xf]
    %v803 = vld [vmem:[%s797 + $0x14] sm:$0xf]
    %v804 = vld [vmem:[%s797 + $0x18] sm:$0xf]
    %v805 = vld [vmem:[%s797 + $0x1c] sm:$0xf]
    %v806 = vld [vmem:[%s797 + $0x20] sm:$0xf]
    %v807 = vld [vmem:[%s797 + $0x24] sm:$0xf]
    %v808 = vld [vmem:[%s797 + $0x28] sm:$0xf]
    %v809 = vld [vmem:[%s797 + $0x2c] sm:$0xf]
    %v812 = vunpack.c.l.b16 %v794
    %v813 = vunpack.c.l.b16 %v796
    %v814 = vpack.c.b16 %v812, %v505
    %v815 = vpack.c.b16 %v813, %v513
    %v828 = vunpack.c.l.b16 %v798
    %v829 = vunpack.c.l.b16 %v799
    %v830 = vunpack.c.l.b16 %v800
    %v831 = vunpack.c.l.b16 %v801
    %v832 = vunpack.c.l.b16 %v802
    %v833 = vunpack.c.l.b16 %v803
    %v834 = vunpack.c.l.b16 %v804
    %v835 = vunpack.c.l.b16 %v805
    %v836 = vunpack.c.l.b16 %v806
    %v837 = vunpack.c.l.b16 %v807
    %v838 = vunpack.c.l.b16 %v808
    %v839 = vunpack.c.l.b16 %v809
    %v840 = vpack.c.b16 %v829, %v828
    %v841 = vpack.c.b16 %v831, %v830
    %v842 = vpack.c.b16 %v833, %v832
    %v843 = vpack.c.b16 %v835, %v834
    %v844 = vpack.c.b16 %v837, %v836
    %v845 = vpack.c.b16 %v839, %v838
    %v853 = vsel %vm558, %v814, 0
    %v856 = vsel %vm558, %v815, 0
    %858 = vmatpush.bf16.msra.mxu0 0
    %859 = vmatpush.bf16.msra.mxu0 0
    %860 = vmatpush.bf16.msra.mxu0 %v845
    %861 = vmatpush.bf16.msra.mxu0 %v844
    %862 = vmatpush.bf16.msra.mxu0 %v843
    %863 = vmatpush.bf16.msra.mxu0 %v842
    %864 = vmatpush.bf16.msra.mxu0 %v841
    %865 = vmatpush.bf16.msra.mxu0 %v840
    %866 = vmatmul.bf16.gmra.mxu0 %v684
    %v867 = vpop.f32.mrf.mxu0
    %v868 = vadd.f32 0.0, %v867
    %v869 = vpop.f32.mrf.mxu0
    %v870 = vadd.f32 0.0, %v869
    %871 = vmatmul.bf16.gmra.mxu0 %v687
    %v872 = vpop.f32.mrf.mxu0
    %v873 = vadd.f32 0.0, %v872
    %v874 = vpop.f32.mrf.mxu0
    %v875 = vadd.f32 0.0, %v874
    %876 = vmatmul.bf16.gmra.mxu0 %v690
    %v877 = vpop.f32.mrf.mxu0
    %v878 = vadd.f32 0.0, %v877
    %v879 = vpop.f32.mrf.mxu0
    %v880 = vadd.f32 0.0, %v879
    %881 = vmatmul.bf16.gmra.mxu0 %v853
    %v882 = vpop.f32.mrf.mxu0
    %v883 = vadd.f32 0.0, %v882
    %v884 = vpop.f32.mrf.mxu0
    %v885 = vadd.f32 0.0, %v884
    %886 = vmatmul.bf16.gmra.mxu0 %v696
    %v887 = vpop.f32.mrf.mxu0
    %v888 = vadd.f32 0.0, %v887
    %v889 = vpop.f32.mrf.mxu0
    %v890 = vadd.f32 0.0, %v889
    %891 = vmatmul.bf16.gmra.mxu0 %v699
    %v892 = vpop.f32.mrf.mxu0
    %v893 = vadd.f32 0.0, %v892
    %v894 = vpop.f32.mrf.mxu0
    %v895 = vadd.f32 0.0, %v894
    %896 = vmatmul.bf16.gmra.mxu0 %v702
    %v897 = vpop.f32.mrf.mxu0
    %v898 = vadd.f32 0.0, %v897
    %v899 = vpop.f32.mrf.mxu0
    %v900 = vadd.f32 0.0, %v899
    %901 = vmatmul.bf16.gmra.mxu0 %v856
    %v902 = vpop.f32.mrf.mxu0
    %v903 = vadd.f32 0.0, %v902
    %v904 = vpop.f32.mrf.mxu0
    %v905 = vadd.f32 0.0, %v904
    %906 = vdwg.mxu0
    %v907 = vadd.f32 %v714, %v868
    %v908 = vadd.f32 %v716, %v870
    %v909 = vadd.f32 %v719, %v873
    %v910 = vadd.f32 %v721, %v875
    %v911 = vadd.f32 %v724, %v878
    %v912 = vadd.f32 %v726, %v880
    %v913 = vadd.f32 %v729, %v883
    %v914 = vadd.f32 %v731, %v885
    %v915 = vadd.f32 %v734, %v888
    %v916 = vadd.f32 %v736, %v890
    %v917 = vadd.f32 %v739, %v893
    %v918 = vadd.f32 %v741, %v895
    %v919 = vadd.f32 %v744, %v898
    %v920 = vadd.f32 %v746, %v900
    %v921 = vadd.f32 %v749, %v903
    %v922 = vadd.f32 %v751, %v905
    %v923 = vld [vmem:[%s2] sm:$0x1]
    %v925 = vperm.slane %v923, 0
    %v927 = vadd.f32 %v907, %v925
    %v928 = vadd.f32 %v908, %v925
    %v929 = vadd.f32 %v909, %v925
    %v930 = vadd.f32 %v910, %v925
    %v931 = vadd.f32 %v911, %v925
    %v932 = vadd.f32 %v912, %v925
    %v933 = vadd.f32 %v913, %v925
    %v934 = vadd.f32 %v914, %v925
    %v935 = vadd.f32 %v915, %v925
    %v936 = vadd.f32 %v916, %v925
    %v937 = vadd.f32 %v917, %v925
    %v938 = vadd.f32 %v918, %v925
    %v939 = vadd.f32 %v919, %v925
    %v940 = vadd.f32 %v920, %v925
    %v941 = vadd.f32 %v921, %v925
    %v942 = vadd.f32 %v922, %v925
    %v943 = vmax.f32 %v927, 0.0
    %v944 = vmax.f32 %v928, 0.0
    %v945 = vmax.f32 %v929, 0.0
    %v946 = vmax.f32 %v930, 0.0
    %v947 = vmax.f32 %v931, 0.0
    %v948 = vmax.f32 %v932, 0.0
    %v949 = vmax.f32 %v933, 0.0
    %v950 = vmax.f32 %v934, 0.0
    %v951 = vmax.f32 %v935, 0.0
    %v952 = vmax.f32 %v936, 0.0
    %v953 = vmax.f32 %v937, 0.0
    %v954 = vmax.f32 %v938, 0.0
    %v955 = vmax.f32 %v939, 0.0
    %v956 = vmax.f32 %v940, 0.0
    %v957 = vmax.f32 %v941, 0.0
    %v958 = vmax.f32 %v942, 0.0
    %v959 = vpack.c.bf16 %v944, %v943
    %v960 = vpack.c.bf16 %v946, %v945
    %v961 = vpack.c.bf16 %v948, %v947
    %v962 = vpack.c.bf16 %v950, %v949
    %v963 = vpack.c.bf16 %v952, %v951
    %v964 = vpack.c.bf16 %v954, %v953
    %v965 = vpack.c.bf16 %v956, %v955
    %v966 = vpack.c.bf16 %v958, %v957
    %v967 = vld [vmem:[%s3] sm:$0xf]
    %v968 = vld [vmem:[%s3 + $0x4] sm:$0xf]
    %v969 = vld [vmem:[%s3 + $0x8] sm:$0xf]
    %v970 = vld [vmem:[%s3 + $0xc] sm:$0xf]
    %v971 = vld [vmem:[%s3 + $0x10] sm:$0xf]
    %v972 = vld [vmem:[%s3 + $0x14] sm:$0xf]
    %v973 = vld [vmem:[%s3 + $0x18] sm:$0xf]
    %v974 = vld [vmem:[%s3 + $0x1c] sm:$0xf]
    %v975 = vld [vmem:[%s3 + $0x20] sm:$0xf]
    %v976 = vld [vmem:[%s3 + $0x24] sm:$0xf]
    %v977 = vld [vmem:[%s3 + $0x28] sm:$0xf]
    %v978 = vld [vmem:[%s3 + $0x2c] sm:$0xf]
    %v979 = vld [vmem:[%s3 + $0x30] sm:$0xf]
    %v980 = vld [vmem:[%s3 + $0x34] sm:$0xf]
    %v981 = vld [vmem:[%s3 + $0x38] sm:$0xf]
    %v982 = vld [vmem:[%s3 + $0x3c] sm:$0xf]
    %v999 = vunpack.c.l.b16 %v967
    %v1000 = vunpack.c.l.b16 %v968
    %v1001 = vunpack.c.l.b16 %v969
    %v1002 = vunpack.c.l.b16 %v970
    %v1003 = vunpack.c.l.b16 %v971
    %v1004 = vunpack.c.l.b16 %v972
    %v1005 = vunpack.c.l.b16 %v973
    %v1006 = vunpack.c.l.b16 %v974
    %v1007 = vunpack.c.l.b16 %v975
    %v1008 = vunpack.c.l.b16 %v976
    %v1009 = vunpack.c.l.b16 %v977
    %v1010 = vunpack.c.l.b16 %v978
    %v1011 = vunpack.c.l.b16 %v979
    %v1012 = vunpack.c.l.b16 %v980
    %v1013 = vunpack.c.l.b16 %v981
    %v1014 = vunpack.c.l.b16 %v982
    %v1015 = vpack.c.b16 %v1000, %v999
    %v1016 = vpack.c.b16 %v1002, %v1001
    %v1017 = vpack.c.b16 %v1004, %v1003
    %v1018 = vpack.c.b16 %v1006, %v1005
    %v1019 = vpack.c.b16 %v1008, %v1007
    %v1020 = vpack.c.b16 %v1010, %v1009
    %v1021 = vpack.c.b16 %v1012, %v1011
    %v1022 = vpack.c.b16 %v1014, %v1013
    %1031 = vmatpush.bf16.msra.mxu0 %v1022
    %1032 = vmatpush.bf16.msra.mxu0 %v1021
    %1033 = vmatpush.bf16.msra.mxu0 %v1020
    %1034 = vmatpush.bf16.msra.mxu0 %v1019
    %1035 = vmatpush.bf16.msra.mxu0 %v1018
    %1036 = vmatpush.bf16.msra.mxu0 %v1017
    %1037 = vmatpush.bf16.msra.mxu0 %v1016
    %1038 = vmatpush.bf16.msra.mxu0 %v1015
    %1039 = vmatmul.bf16.gmra.mxu0 %v959
    %v1040 = vpop.f32.mrf.mxu0
    %v1041 = vadd.f32 0.0, %v1040
    %v1042 = vpop.f32.mrf.mxu0
    %v1043 = vadd.f32 0.0, %v1042
    %1044 = vmatmul.bf16.gmra.mxu0 %v960
    %v1045 = vpop.f32.mrf.mxu0
    %v1046 = vadd.f32 0.0, %v1045
    %v1047 = vpop.f32.mrf.mxu0
    %v1048 = vadd.f32 0.0, %v1047
    %1049 = vmatmul.bf16.gmra.mxu0 %v961
    %v1050 = vpop.f32.mrf.mxu0
    %v1051 = vadd.f32 0.0, %v1050
    %v1052 = vpop.f32.mrf.mxu0
    %v1053 = vadd.f32 0.0, %v1052
    %1054 = vmatmul.bf16.gmra.mxu0 %v962
    %v1055 = vpop.f32.mrf.mxu0
    %v1056 = vadd.f32 0.0, %v1055
    %v1057 = vpop.f32.mrf.mxu0
    %v1058 = vadd.f32 0.0, %v1057
    %1059 = vmatmul.bf16.gmra.mxu0 %v963
    %v1060 = vpop.f32.mrf.mxu0
    %v1061 = vadd.f32 0.0, %v1060
    %v1062 = vpop.f32.mrf.mxu0
    %v1063 = vadd.f32 0.0, %v1062
    %1064 = vmatmul.bf16.gmra.mxu0 %v964
    %v1065 = vpop.f32.mrf.mxu0
    %v1066 = vadd.f32 0.0, %v1065
    %v1067 = vpop.f32.mrf.mxu0
    %v1068 = vadd.f32 0.0, %v1067
    %1069 = vmatmul.bf16.gmra.mxu0 %v965
    %v1070 = vpop.f32.mrf.mxu0
    %v1071 = vadd.f32 0.0, %v1070
    %v1072 = vpop.f32.mrf.mxu0
    %v1073 = vadd.f32 0.0, %v1072
    %1074 = vmatmul.bf16.gmra.mxu0 %v966
    %v1075 = vpop.f32.mrf.mxu0
    %v1076 = vadd.f32 0.0, %v1075
    %v1077 = vpop.f32.mrf.mxu0
    %v1078 = vadd.f32 0.0, %v1077
    %1079 = vdwg.mxu0
    %1080 = vst [vmem:[#allocation2] sm:$0xff] %v1041
    %1081 = vst [vmem:[#allocation2 + $0x8] sm:$0xff] %v1043
    %1082 = vst [vmem:[#allocation2 + $0x10] sm:$0xff] %v1046
    %1083 = vst [vmem:[#allocation2 + $0x18] sm:$0xff] %v1048
    %1084 = vst [vmem:[#allocation2 + $0x20] sm:$0xff] %v1051
    %1085 = vst [vmem:[#allocation2 + $0x28] sm:$0xff] %v1053
    %1086 = vst [vmem:[#allocation2 + $0x30] sm:$0xff] %v1056
    %1087 = vst [vmem:[#allocation2 + $0x38] sm:$0xff] %v1058
    %1088 = vst [vmem:[#allocation2 + $0x40] sm:$0xff] %v1061
    %1089 = vst [vmem:[#allocation2 + $0x48] sm:$0xff] %v1063
    %1090 = vst [vmem:[#allocation2 + $0x50] sm:$0xff] %v1066
    %1091 = vst [vmem:[#allocation2 + $0x58] sm:$0xff] %v1068
    %1092 = vst [vmem:[#allocation2 + $0x60] sm:$0xff] %v1071
    %1093 = vst [vmem:[#allocation2 + $0x68] sm:$0xff] %v1073
    %1094 = vst [vmem:[#allocation2 + $0x70] sm:$0xff] %v1076
    %1095 = vst [vmem:[#allocation2 + $0x78] sm:$0xff] %v1078
    // Predicated region
    $region18: #{tpu_custom_call.1} parent=1 // pred_check
      _
    $region19: #{tpu_custom_call.1} parent=1 // pred_check_branch
      %1097 = sbr.rel (0) target = $region21
    $region20: #{tpu_custom_call.1} parent=1 // pred_region
      %1099 = vsyncadd [#allocation3], 0
      %s1100 = sshll.u32 [#allocation2], 4
      %s1101 = int_to_ptr.vmem [resolvable:$true] %s1100
      %s1102 = sshll.u32 %s4, 4
      %s1103 = int_to_ptr.hbm [resolvable:$true] %s1102
      %1108 = dma.vmem_to_hbm [thread:$0]  %s1101, 2048, %s1103, [#allocation3], 128, 128, 8
    $region21: #{tpu_custom_call.1} parent=1 // pred_fallthru
      _
    // Predicated region
    $region22: #{tpu_custom_call.1} parent=1 // pred_check
      _
    $region23: #{tpu_custom_call.1} parent=1 // pred_check_branch
      %1110 = sbr.rel (0) target = $region25
    $region24: #{tpu_custom_call.1} parent=1 // pred_region
      %1112 = dma.done [#allocation3], 2048
    $region25: #{tpu_custom_call.1} parent=1 // pred_fallthru
      _
    %1113 = vsyncpa [#allocation3], 1

</llo_original>
